<compile_context>
chip_gen: v5e
topology: v5e:2x2
jax: 0.10.0
libtpu: 0.0.40
codegen_flags: <defaults>
</compile_context>

<pallas_src>
import jax
import jax.numpy as jnp
from jax.experimental import pallas as pl
from jax.experimental.pallas import tpu as pltpu


def _round_up(a, m):
    return ((a + m - 1) // m) * m


def mlp_kernel(x_ref, w1_ref, b1_ref, w2_ref, b2_ref, o_ref):
    """Feature-major MLP tile.

    x_ref : (K, TB)  f32 VMEM   -- batch on the 128-lane axis
    w1_ref: (H, K)   f32 SMEM   -- PyTorch nn.Linear layout (out, in)
    b1_ref: (H,)     f32 SMEM
    w2_ref: (C, H)   f32 SMEM
    b2_ref: (C,)     f32 SMEM
    o_ref : (C, TB)  f32 VMEM
    """
    x = x_ref[...]                                   # (K, TB)
    k_in, tb = x_ref.shape
    hidden = w1_ref.shape[0]
    n_out = w2_ref.shape[0]

    # fc1 + ReLU: each hidden unit is an unrolled scalar-times-vector MAC
    # over K (=4).  Pure VPU work on dense (1, TB) vregs.
    h_rows = []
    for j in range(hidden):
        acc = jnp.full((1, tb), b1_ref[j], dtype=jnp.float32)
        for k in range(k_in):
            acc = acc + w1_ref[j, k] * x[k:k + 1, :]
        h_rows.append(jnp.maximum(acc, 0.0))         # ReLU

    # fc2: each class logit is an unrolled scalar-times-vector MAC over
    # H (=8).  Stores are lane-dense (batch on the lane axis), no padding.
    for c in range(n_out):
        y = jnp.full((1, tb), b2_ref[c], dtype=jnp.float32)
        for j in range(hidden):
            y = y + w2_ref[c, j] * h_rows[j]
        o_ref[c:c + 1, :] = y.astype(o_ref.dtype)


def iris_classifier_forward(x, w1, b1, w2, b2, *, tile_b=1024, no_grid_max_b=4096):
    """x: (B, in) f32; weights in PyTorch nn.Linear layout:
       w1: (hidden, in); b1: (hidden,); w2: (classes, hidden); b2: (classes,).
       Returns logits (B, classes)."""
    B, k_in = x.shape
    num_classes = w2.shape[0]

    # Feature-major: batch on the 128-lane axis.  (Tiny (B,4) transpose in XLA;
    # a real pipeline would keep activations feature-major end to end.)
    xT = x.T                                          # (K, B)

    smem = pl.BlockSpec(memory_space=pltpu.MemorySpace.SMEM)
    vmem = pl.BlockSpec(memory_space=pltpu.MemorySpace.VMEM)

    if B <= no_grid_max_b:
        # No-grid path: whole problem VMEM/SMEM-resident, single kernel body.
        out = pl.pallas_call(
            mlp_kernel,
            out_shape=jax.ShapeDtypeStruct((num_classes, B), jnp.float32),
            in_specs=[vmem, smem, smem, smem, smem],
            out_specs=vmem,
        )(xT, w1, b1, w2, b2)
        return out.T                                  # (B, C)

    # Throughput path: tile the batch (lane axis) in multiples of 128; weights
    # stay SMEM-resident across the grid; batch axis is "parallel".
    # Clamp so grid_b >= 2 -> both TensorCores get work on v7x.
    tile_b = min(tile_b, _round_up(pl.cdiv(B, 2), 128))
    tile_b = max(tile_b, 128)
    grid_b = pl.cdiv(B, tile_b)
    b_padded = grid_b * tile_b
    xTp = xT if b_padded == B else jnp.pad(xT, ((0, 0), (0, b_padded - B)))

    out = pl.pallas_call(
        mlp_kernel,
        out_shape=jax.ShapeDtypeStruct((num_classes, b_padded), jnp.float32),
        grid=(grid_b,),
        in_specs=[
            pl.BlockSpec((k_in, tile_b), lambda i: (0, i)),   # x: tiled over batch lanes
            smem, smem, smem, smem,                           # weights resident in SMEM
        ],
        out_specs=pl.BlockSpec((num_classes, tile_b), lambda i: (0, i)),
        compiler_params=pltpu.CompilerParams(
            dimension_semantics=("parallel",)),
    )(xTp, w1, b1, w2, b2)
    return out[:, :B].T                               # padded lanes discarded


def init_params(key, input_size=4, hidden_size=8, num_classes=3):
    # Deterministic init mimicking nn.Linear's uniform(-1/sqrt(fan_in), 1/sqrt(fan_in)).
    # Weights kept in PyTorch's native (out_features, in_features) layout.
    k1, k2, k3, k4 = jax.random.split(key, 4)
    lim1 = 1.0 / jnp.sqrt(jnp.float32(input_size))
    lim2 = 1.0 / jnp.sqrt(jnp.float32(hidden_size))
    w1 = jax.random.uniform(k1, (hidden_size, input_size), jnp.float32, -lim1, lim1)
    b1 = jax.random.uniform(k2, (hidden_size,), jnp.float32, -lim1, lim1)
    w2 = jax.random.uniform(k3, (num_classes, hidden_size), jnp.float32, -lim2, lim2)
    b2 = jax.random.uniform(k4, (num_classes,), jnp.float32, -lim2, lim2)
    return w1, b1, w2, b2


if __name__ == "__main__":
    key = jax.random.PRNGKey(0)
    kx, kp, kx2 = jax.random.split(key, 3)

    batch, input_size, hidden_size, num_classes = 8, 4, 8, 3
    x = jax.random.normal(kx, (batch, input_size), jnp.float32)
    w1, b1, w2, b2 = init_params(kp, input_size, hidden_size, num_classes)

    # Small-batch (no-grid, fully resident) path.
    logits = jax.block_until_ready(iris_classifier_forward(x, w1, b1, w2, b2))
    ref = jnp.maximum(x @ w1.T + b1, 0.0) @ w2.T + b2
    assert logits.shape == (batch, num_classes)
    assert jnp.allclose(logits, ref, atol=1e-5, rtol=1e-5)

    # Exercise the batch-tiled throughput path (grid over batch lanes, resident
    # SMEM weights, "parallel" axis) by forcing the grid branch; batch is
    # deliberately not a multiple of the tile to cover pad + lane masking.
    big_batch = 1000
    xb = jax.random.normal(kx2, (big_batch, input_size), jnp.float32)
    logits_b = jax.block_until_ready(
        iris_classifier_forward(xb, w1, b1, w2, b2, tile_b=128, no_grid_max_b=0))
    ref_b = jnp.maximum(xb @ w1.T + b1, 0.0) @ w2.T + b2
    assert logits_b.shape == (big_batch, num_classes)
    assert jnp.allclose(logits_b, ref_b, atol=1e-5, rtol=1e-5)

    print("KERNEL_OK")
</pallas_src>

<mosaic_0001>
module attributes {stable_mosaic.version = 11 : i64} {
  func.func @mlp_kernel(%arg0: memref<4x8xf32, #tpu.memory_space<vmem>>, %arg1: memref<8x4xf32, #tpu.memory_space<smem>>, %arg2: memref<8xf32, #tpu.memory_space<smem>>, %arg3: memref<3x8xf32, #tpu.memory_space<smem>>, %arg4: memref<3xf32, #tpu.memory_space<smem>>, %arg5: memref<3x8xf32, #tpu.memory_space<vmem>>) attributes {dimension_semantics = [], scalar_prefetch = 0 : i64, scratch_operands = 0 : i64, tpu.core_type = #tpu.core_type<tc>} {
    %c0 = arith.constant 0 : index
    %c0_0 = arith.constant 0 : index
    %0 = vector.load %arg0[%c0, %c0_0] : memref<4x8xf32, #tpu.memory_space<vmem>>, vector<4x8xf32>
    %c0_1 = arith.constant 0 : index
    %1 = memref.load %arg2[%c0_1] : memref<8xf32, #tpu.memory_space<smem>>
    %2 = vector.broadcast %1 : f32 to vector<1x8xf32>
    %c0_2 = arith.constant 0 : index
    %c0_3 = arith.constant 0 : index
    %3 = memref.load %arg1[%c0_2, %c0_3] : memref<8x4xf32, #tpu.memory_space<smem>>
    %4 = vector.extract_strided_slice %0 {offsets = [0, 0], sizes = [1, 8], strides = [1, 1]} : vector<4x8xf32> to vector<1x8xf32>
    %5 = vector.broadcast %3 : f32 to vector<1x8xf32>
    %6 = arith.mulf %5, %4 : vector<1x8xf32>
    %7 = arith.addf %2, %6 : vector<1x8xf32>
    %c0_4 = arith.constant 0 : index
    %c1 = arith.constant 1 : index
    %8 = memref.load %arg1[%c0_4, %c1] : memref<8x4xf32, #tpu.memory_space<smem>>
    %9 = vector.extract_strided_slice %0 {offsets = [1, 0], sizes = [1, 8], strides = [1, 1]} : vector<4x8xf32> to vector<1x8xf32>
    %10 = vector.broadcast %8 : f32 to vector<1x8xf32>
    %11 = arith.mulf %10, %9 : vector<1x8xf32>
    %12 = arith.addf %7, %11 : vector<1x8xf32>
    %c0_5 = arith.constant 0 : index
    %c2 = arith.constant 2 : index
    %13 = memref.load %arg1[%c0_5, %c2] : memref<8x4xf32, #tpu.memory_space<smem>>
    %14 = vector.extract_strided_slice %0 {offsets = [2, 0], sizes = [1, 8], strides = [1, 1]} : vector<4x8xf32> to vector<1x8xf32>
    %15 = vector.broadcast %13 : f32 to vector<1x8xf32>
    %16 = arith.mulf %15, %14 : vector<1x8xf32>
    %17 = arith.addf %12, %16 : vector<1x8xf32>
    %c0_6 = arith.constant 0 : index
    %c3 = arith.constant 3 : index
    %18 = memref.load %arg1[%c0_6, %c3] : memref<8x4xf32, #tpu.memory_space<smem>>
    %19 = vector.extract_strided_slice %0 {offsets = [3, 0], sizes = [1, 8], strides = [1, 1]} : vector<4x8xf32> to vector<1x8xf32>
    %20 = vector.broadcast %18 : f32 to vector<1x8xf32>
    %21 = arith.mulf %20, %19 : vector<1x8xf32>
    %22 = arith.addf %17, %21 : vector<1x8xf32>
    %cst = arith.constant 0.000000e+00 : f32
    %23 = vector.broadcast %cst : f32 to vector<1x8xf32>
    %24 = arith.maximumf %22, %23 : vector<1x8xf32>
    %c1_7 = arith.constant 1 : index
    %25 = memref.load %arg2[%c1_7] : memref<8xf32, #tpu.memory_space<smem>>
    %26 = vector.broadcast %25 : f32 to vector<1x8xf32>
    %c1_8 = arith.constant 1 : index
    %c0_9 = arith.constant 0 : index
    %27 = memref.load %arg1[%c1_8, %c0_9] : memref<8x4xf32, #tpu.memory_space<smem>>
    %28 = vector.extract_strided_slice %0 {offsets = [0, 0], sizes = [1, 8], strides = [1, 1]} : vector<4x8xf32> to vector<1x8xf32>
    %29 = vector.broadcast %27 : f32 to vector<1x8xf32>
    %30 = arith.mulf %29, %28 : vector<1x8xf32>
    %31 = arith.addf %26, %30 : vector<1x8xf32>
    %c1_10 = arith.constant 1 : index
    %c1_11 = arith.constant 1 : index
    %32 = memref.load %arg1[%c1_10, %c1_11] : memref<8x4xf32, #tpu.memory_space<smem>>
    %33 = vector.extract_strided_slice %0 {offsets = [1, 0], sizes = [1, 8], strides = [1, 1]} : vector<4x8xf32> to vector<1x8xf32>
    %34 = vector.broadcast %32 : f32 to vector<1x8xf32>
    %35 = arith.mulf %34, %33 : vector<1x8xf32>
    %36 = arith.addf %31, %35 : vector<1x8xf32>
    %c1_12 = arith.constant 1 : index
    %c2_13 = arith.constant 2 : index
    %37 = memref.load %arg1[%c1_12, %c2_13] : memref<8x4xf32, #tpu.memory_space<smem>>
    %38 = vector.extract_strided_slice %0 {offsets = [2, 0], sizes = [1, 8], strides = [1, 1]} : vector<4x8xf32> to vector<1x8xf32>
    %39 = vector.broadcast %37 : f32 to vector<1x8xf32>
    %40 = arith.mulf %39, %38 : vector<1x8xf32>
    %41 = arith.addf %36, %40 : vector<1x8xf32>
    %c1_14 = arith.constant 1 : index
    %c3_15 = arith.constant 3 : index
    %42 = memref.load %arg1[%c1_14, %c3_15] : memref<8x4xf32, #tpu.memory_space<smem>>
    %43 = vector.extract_strided_slice %0 {offsets = [3, 0], sizes = [1, 8], strides = [1, 1]} : vector<4x8xf32> to vector<1x8xf32>
    %44 = vector.broadcast %42 : f32 to vector<1x8xf32>
    %45 = arith.mulf %44, %43 : vector<1x8xf32>
    %46 = arith.addf %41, %45 : vector<1x8xf32>
    %cst_16 = arith.constant 0.000000e+00 : f32
    %47 = vector.broadcast %cst_16 : f32 to vector<1x8xf32>
    %48 = arith.maximumf %46, %47 : vector<1x8xf32>
    %c2_17 = arith.constant 2 : index
    %49 = memref.load %arg2[%c2_17] : memref<8xf32, #tpu.memory_space<smem>>
    %50 = vector.broadcast %49 : f32 to vector<1x8xf32>
    %c2_18 = arith.constant 2 : index
    %c0_19 = arith.constant 0 : index
    %51 = memref.load %arg1[%c2_18, %c0_19] : memref<8x4xf32, #tpu.memory_space<smem>>
    %52 = vector.extract_strided_slice %0 {offsets = [0, 0], sizes = [1, 8], strides = [1, 1]} : vector<4x8xf32> to vector<1x8xf32>
    %53 = vector.broadcast %51 : f32 to vector<1x8xf32>
    %54 = arith.mulf %53, %52 : vector<1x8xf32>
    %55 = arith.addf %50, %54 : vector<1x8xf32>
    %c2_20 = arith.constant 2 : index
    %c1_21 = arith.constant 1 : index
    %56 = memref.load %arg1[%c2_20, %c1_21] : memref<8x4xf32, #tpu.memory_space<smem>>
    %57 = vector.extract_strided_slice %0 {offsets = [1, 0], sizes = [1, 8], strides = [1, 1]} : vector<4x8xf32> to vector<1x8xf32>
    %58 = vector.broadcast %56 : f32 to vector<1x8xf32>
    %59 = arith.mulf %58, %57 : vector<1x8xf32>
    %60 = arith.addf %55, %59 : vector<1x8xf32>
    %c2_22 = arith.constant 2 : index
    %c2_23 = arith.constant 2 : index
    %61 = memref.load %arg1[%c2_22, %c2_23] : memref<8x4xf32, #tpu.memory_space<smem>>
    %62 = vector.extract_strided_slice %0 {offsets = [2, 0], sizes = [1, 8], strides = [1, 1]} : vector<4x8xf32> to vector<1x8xf32>
    %63 = vector.broadcast %61 : f32 to vector<1x8xf32>
    %64 = arith.mulf %63, %62 : vector<1x8xf32>
    %65 = arith.addf %60, %64 : vector<1x8xf32>
    %c2_24 = arith.constant 2 : index
    %c3_25 = arith.constant 3 : index
    %66 = memref.load %arg1[%c2_24, %c3_25] : memref<8x4xf32, #tpu.memory_space<smem>>
    %67 = vector.extract_strided_slice %0 {offsets = [3, 0], sizes = [1, 8], strides = [1, 1]} : vector<4x8xf32> to vector<1x8xf32>
    %68 = vector.broadcast %66 : f32 to vector<1x8xf32>
    %69 = arith.mulf %68, %67 : vector<1x8xf32>
    %70 = arith.addf %65, %69 : vector<1x8xf32>
    %cst_26 = arith.constant 0.000000e+00 : f32
    %71 = vector.broadcast %cst_26 : f32 to vector<1x8xf32>
    %72 = arith.maximumf %70, %71 : vector<1x8xf32>
    %c3_27 = arith.constant 3 : index
    %73 = memref.load %arg2[%c3_27] : memref<8xf32, #tpu.memory_space<smem>>
    %74 = vector.broadcast %73 : f32 to vector<1x8xf32>
    %c3_28 = arith.constant 3 : index
    %c0_29 = arith.constant 0 : index
    %75 = memref.load %arg1[%c3_28, %c0_29] : memref<8x4xf32, #tpu.memory_space<smem>>
    %76 = vector.extract_strided_slice %0 {offsets = [0, 0], sizes = [1, 8], strides = [1, 1]} : vector<4x8xf32> to vector<1x8xf32>
    %77 = vector.broadcast %75 : f32 to vector<1x8xf32>
    %78 = arith.mulf %77, %76 : vector<1x8xf32>
    %79 = arith.addf %74, %78 : vector<1x8xf32>
    %c3_30 = arith.constant 3 : index
    %c1_31 = arith.constant 1 : index
    %80 = memref.load %arg1[%c3_30, %c1_31] : memref<8x4xf32, #tpu.memory_space<smem>>
    %81 = vector.extract_strided_slice %0 {offsets = [1, 0], sizes = [1, 8], strides = [1, 1]} : vector<4x8xf32> to vector<1x8xf32>
    %82 = vector.broadcast %80 : f32 to vector<1x8xf32>
    %83 = arith.mulf %82, %81 : vector<1x8xf32>
    %84 = arith.addf %79, %83 : vector<1x8xf32>
    %c3_32 = arith.constant 3 : index
    %c2_33 = arith.constant 2 : index
    %85 = memref.load %arg1[%c3_32, %c2_33] : memref<8x4xf32, #tpu.memory_space<smem>>
    %86 = vector.extract_strided_slice %0 {offsets = [2, 0], sizes = [1, 8], strides = [1, 1]} : vector<4x8xf32> to vector<1x8xf32>
    %87 = vector.broadcast %85 : f32 to vector<1x8xf32>
    %88 = arith.mulf %87, %86 : vector<1x8xf32>
    %89 = arith.addf %84, %88 : vector<1x8xf32>
    %c3_34 = arith.constant 3 : index
    %c3_35 = arith.constant 3 : index
    %90 = memref.load %arg1[%c3_34, %c3_35] : memref<8x4xf32, #tpu.memory_space<smem>>
    %91 = vector.extract_strided_slice %0 {offsets = [3, 0], sizes = [1, 8], strides = [1, 1]} : vector<4x8xf32> to vector<1x8xf32>
    %92 = vector.broadcast %90 : f32 to vector<1x8xf32>
    %93 = arith.mulf %92, %91 : vector<1x8xf32>
    %94 = arith.addf %89, %93 : vector<1x8xf32>
    %cst_36 = arith.constant 0.000000e+00 : f32
    %95 = vector.broadcast %cst_36 : f32 to vector<1x8xf32>
    %96 = arith.maximumf %94, %95 : vector<1x8xf32>
    %c4 = arith.constant 4 : index
    %97 = memref.load %arg2[%c4] : memref<8xf32, #tpu.memory_space<smem>>
    %98 = vector.broadcast %97 : f32 to vector<1x8xf32>
    %c4_37 = arith.constant 4 : index
    %c0_38 = arith.constant 0 : index
    %99 = memref.load %arg1[%c4_37, %c0_38] : memref<8x4xf32, #tpu.memory_space<smem>>
    %100 = vector.extract_strided_slice %0 {offsets = [0, 0], sizes = [1, 8], strides = [1, 1]} : vector<4x8xf32> to vector<1x8xf32>
    %101 = vector.broadcast %99 : f32 to vector<1x8xf32>
    %102 = arith.mulf %101, %100 : vector<1x8xf32>
    %103 = arith.addf %98, %102 : vector<1x8xf32>
    %c4_39 = arith.constant 4 : index
    %c1_40 = arith.constant 1 : index
    %104 = memref.load %arg1[%c4_39, %c1_40] : memref<8x4xf32, #tpu.memory_space<smem>>
    %105 = vector.extract_strided_slice %0 {offsets = [1, 0], sizes = [1, 8], strides = [1, 1]} : vector<4x8xf32> to vector<1x8xf32>
    %106 = vector.broadcast %104 : f32 to vector<1x8xf32>
    %107 = arith.mulf %106, %105 : vector<1x8xf32>
    %108 = arith.addf %103, %107 : vector<1x8xf32>
    %c4_41 = arith.constant 4 : index
    %c2_42 = arith.constant 2 : index
    %109 = memref.load %arg1[%c4_41, %c2_42] : memref<8x4xf32, #tpu.memory_space<smem>>
    %110 = vector.extract_strided_slice %0 {offsets = [2, 0], sizes = [1, 8], strides = [1, 1]} : vector<4x8xf32> to vector<1x8xf32>
    %111 = vector.broadcast %109 : f32 to vector<1x8xf32>
    %112 = arith.mulf %111, %110 : vector<1x8xf32>
    %113 = arith.addf %108, %112 : vector<1x8xf32>
    %c4_43 = arith.constant 4 : index
    %c3_44 = arith.constant 3 : index
    %114 = memref.load %arg1[%c4_43, %c3_44] : memref<8x4xf32, #tpu.memory_space<smem>>
    %115 = vector.extract_strided_slice %0 {offsets = [3, 0], sizes = [1, 8], strides = [1, 1]} : vector<4x8xf32> to vector<1x8xf32>
    %116 = vector.broadcast %114 : f32 to vector<1x8xf32>
    %117 = arith.mulf %116, %115 : vector<1x8xf32>
    %118 = arith.addf %113, %117 : vector<1x8xf32>
    %cst_45 = arith.constant 0.000000e+00 : f32
    %119 = vector.broadcast %cst_45 : f32 to vector<1x8xf32>
    %120 = arith.maximumf %118, %119 : vector<1x8xf32>
    %c5 = arith.constant 5 : index
    %121 = memref.load %arg2[%c5] : memref<8xf32, #tpu.memory_space<smem>>
    %122 = vector.broadcast %121 : f32 to vector<1x8xf32>
    %c5_46 = arith.constant 5 : index
    %c0_47 = arith.constant 0 : index
    %123 = memref.load %arg1[%c5_46, %c0_47] : memref<8x4xf32, #tpu.memory_space<smem>>
    %124 = vector.extract_strided_slice %0 {offsets = [0, 0], sizes = [1, 8], strides = [1, 1]} : vector<4x8xf32> to vector<1x8xf32>
    %125 = vector.broadcast %123 : f32 to vector<1x8xf32>
    %126 = arith.mulf %125, %124 : vector<1x8xf32>
    %127 = arith.addf %122, %126 : vector<1x8xf32>
    %c5_48 = arith.constant 5 : index
    %c1_49 = arith.constant 1 : index
    %128 = memref.load %arg1[%c5_48, %c1_49] : memref<8x4xf32, #tpu.memory_space<smem>>
    %129 = vector.extract_strided_slice %0 {offsets = [1, 0], sizes = [1, 8], strides = [1, 1]} : vector<4x8xf32> to vector<1x8xf32>
    %130 = vector.broadcast %128 : f32 to vector<1x8xf32>
    %131 = arith.mulf %130, %129 : vector<1x8xf32>
    %132 = arith.addf %127, %131 : vector<1x8xf32>
    %c5_50 = arith.constant 5 : index
    %c2_51 = arith.constant 2 : index
    %133 = memref.load %arg1[%c5_50, %c2_51] : memref<8x4xf32, #tpu.memory_space<smem>>
    %134 = vector.extract_strided_slice %0 {offsets = [2, 0], sizes = [1, 8], strides = [1, 1]} : vector<4x8xf32> to vector<1x8xf32>
    %135 = vector.broadcast %133 : f32 to vector<1x8xf32>
    %136 = arith.mulf %135, %134 : vector<1x8xf32>
    %137 = arith.addf %132, %136 : vector<1x8xf32>
    %c5_52 = arith.constant 5 : index
    %c3_53 = arith.constant 3 : index
    %138 = memref.load %arg1[%c5_52, %c3_53] : memref<8x4xf32, #tpu.memory_space<smem>>
    %139 = vector.extract_strided_slice %0 {offsets = [3, 0], sizes = [1, 8], strides = [1, 1]} : vector<4x8xf32> to vector<1x8xf32>
    %140 = vector.broadcast %138 : f32 to vector<1x8xf32>
    %141 = arith.mulf %140, %139 : vector<1x8xf32>
    %142 = arith.addf %137, %141 : vector<1x8xf32>
    %cst_54 = arith.constant 0.000000e+00 : f32
    %143 = vector.broadcast %cst_54 : f32 to vector<1x8xf32>
    %144 = arith.maximumf %142, %143 : vector<1x8xf32>
    %c6 = arith.constant 6 : index
    %145 = memref.load %arg2[%c6] : memref<8xf32, #tpu.memory_space<smem>>
    %146 = vector.broadcast %145 : f32 to vector<1x8xf32>
    %c6_55 = arith.constant 6 : index
    %c0_56 = arith.constant 0 : index
    %147 = memref.load %arg1[%c6_55, %c0_56] : memref<8x4xf32, #tpu.memory_space<smem>>
    %148 = vector.extract_strided_slice %0 {offsets = [0, 0], sizes = [1, 8], strides = [1, 1]} : vector<4x8xf32> to vector<1x8xf32>
    %149 = vector.broadcast %147 : f32 to vector<1x8xf32>
    %150 = arith.mulf %149, %148 : vector<1x8xf32>
    %151 = arith.addf %146, %150 : vector<1x8xf32>
    %c6_57 = arith.constant 6 : index
    %c1_58 = arith.constant 1 : index
    %152 = memref.load %arg1[%c6_57, %c1_58] : memref<8x4xf32, #tpu.memory_space<smem>>
    %153 = vector.extract_strided_slice %0 {offsets = [1, 0], sizes = [1, 8], strides = [1, 1]} : vector<4x8xf32> to vector<1x8xf32>
    %154 = vector.broadcast %152 : f32 to vector<1x8xf32>
    %155 = arith.mulf %154, %153 : vector<1x8xf32>
    %156 = arith.addf %151, %155 : vector<1x8xf32>
    %c6_59 = arith.constant 6 : index
    %c2_60 = arith.constant 2 : index
    %157 = memref.load %arg1[%c6_59, %c2_60] : memref<8x4xf32, #tpu.memory_space<smem>>
    %158 = vector.extract_strided_slice %0 {offsets = [2, 0], sizes = [1, 8], strides = [1, 1]} : vector<4x8xf32> to vector<1x8xf32>
    %159 = vector.broadcast %157 : f32 to vector<1x8xf32>
    %160 = arith.mulf %159, %158 : vector<1x8xf32>
    %161 = arith.addf %156, %160 : vector<1x8xf32>
    %c6_61 = arith.constant 6 : index
    %c3_62 = arith.constant 3 : index
    %162 = memref.load %arg1[%c6_61, %c3_62] : memref<8x4xf32, #tpu.memory_space<smem>>
    %163 = vector.extract_strided_slice %0 {offsets = [3, 0], sizes = [1, 8], strides = [1, 1]} : vector<4x8xf32> to vector<1x8xf32>
    %164 = vector.broadcast %162 : f32 to vector<1x8xf32>
    %165 = arith.mulf %164, %163 : vector<1x8xf32>
    %166 = arith.addf %161, %165 : vector<1x8xf32>
    %cst_63 = arith.constant 0.000000e+00 : f32
    %167 = vector.broadcast %cst_63 : f32 to vector<1x8xf32>
    %168 = arith.maximumf %166, %167 : vector<1x8xf32>
    %c7 = arith.constant 7 : index
    %169 = memref.load %arg2[%c7] : memref<8xf32, #tpu.memory_space<smem>>
    %170 = vector.broadcast %169 : f32 to vector<1x8xf32>
    %c7_64 = arith.constant 7 : index
    %c0_65 = arith.constant 0 : index
    %171 = memref.load %arg1[%c7_64, %c0_65] : memref<8x4xf32, #tpu.memory_space<smem>>
    %172 = vector.extract_strided_slice %0 {offsets = [0, 0], sizes = [1, 8], strides = [1, 1]} : vector<4x8xf32> to vector<1x8xf32>
    %173 = vector.broadcast %171 : f32 to vector<1x8xf32>
    %174 = arith.mulf %173, %172 : vector<1x8xf32>
    %175 = arith.addf %170, %174 : vector<1x8xf32>
    %c7_66 = arith.constant 7 : index
    %c1_67 = arith.constant 1 : index
    %176 = memref.load %arg1[%c7_66, %c1_67] : memref<8x4xf32, #tpu.memory_space<smem>>
    %177 = vector.extract_strided_slice %0 {offsets = [1, 0], sizes = [1, 8], strides = [1, 1]} : vector<4x8xf32> to vector<1x8xf32>
    %178 = vector.broadcast %176 : f32 to vector<1x8xf32>
    %179 = arith.mulf %178, %177 : vector<1x8xf32>
    %180 = arith.addf %175, %179 : vector<1x8xf32>
    %c7_68 = arith.constant 7 : index
    %c2_69 = arith.constant 2 : index
    %181 = memref.load %arg1[%c7_68, %c2_69] : memref<8x4xf32, #tpu.memory_space<smem>>
    %182 = vector.extract_strided_slice %0 {offsets = [2, 0], sizes = [1, 8], strides = [1, 1]} : vector<4x8xf32> to vector<1x8xf32>
    %183 = vector.broadcast %181 : f32 to vector<1x8xf32>
    %184 = arith.mulf %183, %182 : vector<1x8xf32>
    %185 = arith.addf %180, %184 : vector<1x8xf32>
    %c7_70 = arith.constant 7 : index
    %c3_71 = arith.constant 3 : index
    %186 = memref.load %arg1[%c7_70, %c3_71] : memref<8x4xf32, #tpu.memory_space<smem>>
    %187 = vector.extract_strided_slice %0 {offsets = [3, 0], sizes = [1, 8], strides = [1, 1]} : vector<4x8xf32> to vector<1x8xf32>
    %188 = vector.broadcast %186 : f32 to vector<1x8xf32>
    %189 = arith.mulf %188, %187 : vector<1x8xf32>
    %190 = arith.addf %185, %189 : vector<1x8xf32>
    %cst_72 = arith.constant 0.000000e+00 : f32
    %191 = vector.broadcast %cst_72 : f32 to vector<1x8xf32>
    %192 = arith.maximumf %190, %191 : vector<1x8xf32>
    %c0_73 = arith.constant 0 : index
    %193 = memref.load %arg4[%c0_73] : memref<3xf32, #tpu.memory_space<smem>>
    %194 = vector.broadcast %193 : f32 to vector<1x8xf32>
    %c0_74 = arith.constant 0 : index
    %c0_75 = arith.constant 0 : index
    %195 = memref.load %arg3[%c0_74, %c0_75] : memref<3x8xf32, #tpu.memory_space<smem>>
    %196 = vector.broadcast %195 : f32 to vector<1x8xf32>
    %197 = arith.mulf %196, %24 : vector<1x8xf32>
    %198 = arith.addf %194, %197 : vector<1x8xf32>
    %c0_76 = arith.constant 0 : index
    %c1_77 = arith.constant 1 : index
    %199 = memref.load %arg3[%c0_76, %c1_77] : memref<3x8xf32, #tpu.memory_space<smem>>
    %200 = vector.broadcast %199 : f32 to vector<1x8xf32>
    %201 = arith.mulf %200, %48 : vector<1x8xf32>
    %202 = arith.addf %198, %201 : vector<1x8xf32>
    %c0_78 = arith.constant 0 : index
    %c2_79 = arith.constant 2 : index
    %203 = memref.load %arg3[%c0_78, %c2_79] : memref<3x8xf32, #tpu.memory_space<smem>>
    %204 = vector.broadcast %203 : f32 to vector<1x8xf32>
    %205 = arith.mulf %204, %72 : vector<1x8xf32>
    %206 = arith.addf %202, %205 : vector<1x8xf32>
    %c0_80 = arith.constant 0 : index
    %c3_81 = arith.constant 3 : index
    %207 = memref.load %arg3[%c0_80, %c3_81] : memref<3x8xf32, #tpu.memory_space<smem>>
    %208 = vector.broadcast %207 : f32 to vector<1x8xf32>
    %209 = arith.mulf %208, %96 : vector<1x8xf32>
    %210 = arith.addf %206, %209 : vector<1x8xf32>
    %c0_82 = arith.constant 0 : index
    %c4_83 = arith.constant 4 : index
    %211 = memref.load %arg3[%c0_82, %c4_83] : memref<3x8xf32, #tpu.memory_space<smem>>
    %212 = vector.broadcast %211 : f32 to vector<1x8xf32>
    %213 = arith.mulf %212, %120 : vector<1x8xf32>
    %214 = arith.addf %210, %213 : vector<1x8xf32>
    %c0_84 = arith.constant 0 : index
    %c5_85 = arith.constant 5 : index
    %215 = memref.load %arg3[%c0_84, %c5_85] : memref<3x8xf32, #tpu.memory_space<smem>>
    %216 = vector.broadcast %215 : f32 to vector<1x8xf32>
    %217 = arith.mulf %216, %144 : vector<1x8xf32>
    %218 = arith.addf %214, %217 : vector<1x8xf32>
    %c0_86 = arith.constant 0 : index
    %c6_87 = arith.constant 6 : index
    %219 = memref.load %arg3[%c0_86, %c6_87] : memref<3x8xf32, #tpu.memory_space<smem>>
    %220 = vector.broadcast %219 : f32 to vector<1x8xf32>
    %221 = arith.mulf %220, %168 : vector<1x8xf32>
    %222 = arith.addf %218, %221 : vector<1x8xf32>
    %c0_88 = arith.constant 0 : index
    %c7_89 = arith.constant 7 : index
    %223 = memref.load %arg3[%c0_88, %c7_89] : memref<3x8xf32, #tpu.memory_space<smem>>
    %224 = vector.broadcast %223 : f32 to vector<1x8xf32>
    %225 = arith.mulf %224, %192 : vector<1x8xf32>
    %226 = arith.addf %222, %225 : vector<1x8xf32>
    %c0_90 = arith.constant 0 : index
    %c0_91 = arith.constant 0 : index
    %227 = vector.load %arg5[%c0_90, %c0_91] : memref<3x8xf32, #tpu.memory_space<vmem>>, vector<1x8xf32>
    tpu.vector_store %arg5[%c0_90, %c0_91], %226 {strides = array<i32>} : memref<3x8xf32, #tpu.memory_space<vmem>>, vector<1x8xf32>,
    %c1_92 = arith.constant 1 : index
    %228 = memref.load %arg4[%c1_92] : memref<3xf32, #tpu.memory_space<smem>>
    %229 = vector.broadcast %228 : f32 to vector<1x8xf32>
    %c1_93 = arith.constant 1 : index
    %c0_94 = arith.constant 0 : index
    %230 = memref.load %arg3[%c1_93, %c0_94] : memref<3x8xf32, #tpu.memory_space<smem>>
    %231 = vector.broadcast %230 : f32 to vector<1x8xf32>
    %232 = arith.mulf %231, %24 : vector<1x8xf32>
    %233 = arith.addf %229, %232 : vector<1x8xf32>
    %c1_95 = arith.constant 1 : index
    %c1_96 = arith.constant 1 : index
    %234 = memref.load %arg3[%c1_95, %c1_96] : memref<3x8xf32, #tpu.memory_space<smem>>
    %235 = vector.broadcast %234 : f32 to vector<1x8xf32>
    %236 = arith.mulf %235, %48 : vector<1x8xf32>
    %237 = arith.addf %233, %236 : vector<1x8xf32>
    %c1_97 = arith.constant 1 : index
    %c2_98 = arith.constant 2 : index
    %238 = memref.load %arg3[%c1_97, %c2_98] : memref<3x8xf32, #tpu.memory_space<smem>>
    %239 = vector.broadcast %238 : f32 to vector<1x8xf32>
    %240 = arith.mulf %239, %72 : vector<1x8xf32>
    %241 = arith.addf %237, %240 : vector<1x8xf32>
    %c1_99 = arith.constant 1 : index
    %c3_100 = arith.constant 3 : index
    %242 = memref.load %arg3[%c1_99, %c3_100] : memref<3x8xf32, #tpu.memory_space<smem>>
    %243 = vector.broadcast %242 : f32 to vector<1x8xf32>
    %244 = arith.mulf %243, %96 : vector<1x8xf32>
    %245 = arith.addf %241, %244 : vector<1x8xf32>
    %c1_101 = arith.constant 1 : index
    %c4_102 = arith.constant 4 : index
    %246 = memref.load %arg3[%c1_101, %c4_102] : memref<3x8xf32, #tpu.memory_space<smem>>
    %247 = vector.broadcast %246 : f32 to vector<1x8xf32>
    %248 = arith.mulf %247, %120 : vector<1x8xf32>
    %249 = arith.addf %245, %248 : vector<1x8xf32>
    %c1_103 = arith.constant 1 : index
    %c5_104 = arith.constant 5 : index
    %250 = memref.load %arg3[%c1_103, %c5_104] : memref<3x8xf32, #tpu.memory_space<smem>>
    %251 = vector.broadcast %250 : f32 to vector<1x8xf32>
    %252 = arith.mulf %251, %144 : vector<1x8xf32>
    %253 = arith.addf %249, %252 : vector<1x8xf32>
    %c1_105 = arith.constant 1 : index
    %c6_106 = arith.constant 6 : index
    %254 = memref.load %arg3[%c1_105, %c6_106] : memref<3x8xf32, #tpu.memory_space<smem>>
    %255 = vector.broadcast %254 : f32 to vector<1x8xf32>
    %256 = arith.mulf %255, %168 : vector<1x8xf32>
    %257 = arith.addf %253, %256 : vector<1x8xf32>
    %c1_107 = arith.constant 1 : index
    %c7_108 = arith.constant 7 : index
    %258 = memref.load %arg3[%c1_107, %c7_108] : memref<3x8xf32, #tpu.memory_space<smem>>
    %259 = vector.broadcast %258 : f32 to vector<1x8xf32>
    %260 = arith.mulf %259, %192 : vector<1x8xf32>
    %261 = arith.addf %257, %260 : vector<1x8xf32>
    %c1_109 = arith.constant 1 : index
    %c0_110 = arith.constant 0 : index
    %262 = vector.load %arg5[%c1_109, %c0_110] : memref<3x8xf32, #tpu.memory_space<vmem>>, vector<1x8xf32>
    tpu.vector_store %arg5[%c1_109, %c0_110], %261 {strides = array<i32>} : memref<3x8xf32, #tpu.memory_space<vmem>>, vector<1x8xf32>,
    %c2_111 = arith.constant 2 : index
    %263 = memref.load %arg4[%c2_111] : memref<3xf32, #tpu.memory_space<smem>>
    %264 = vector.broadcast %263 : f32 to vector<1x8xf32>
    %c2_112 = arith.constant 2 : index
    %c0_113 = arith.constant 0 : index
    %265 = memref.load %arg3[%c2_112, %c0_113] : memref<3x8xf32, #tpu.memory_space<smem>>
    %266 = vector.broadcast %265 : f32 to vector<1x8xf32>
    %267 = arith.mulf %266, %24 : vector<1x8xf32>
    %268 = arith.addf %264, %267 : vector<1x8xf32>
    %c2_114 = arith.constant 2 : index
    %c1_115 = arith.constant 1 : index
    %269 = memref.load %arg3[%c2_114, %c1_115] : memref<3x8xf32, #tpu.memory_space<smem>>
    %270 = vector.broadcast %269 : f32 to vector<1x8xf32>
    %271 = arith.mulf %270, %48 : vector<1x8xf32>
    %272 = arith.addf %268, %271 : vector<1x8xf32>
    %c2_116 = arith.constant 2 : index
    %c2_117 = arith.constant 2 : index
    %273 = memref.load %arg3[%c2_116, %c2_117] : memref<3x8xf32, #tpu.memory_space<smem>>
    %274 = vector.broadcast %273 : f32 to vector<1x8xf32>
    %275 = arith.mulf %274, %72 : vector<1x8xf32>
    %276 = arith.addf %272, %275 : vector<1x8xf32>
    %c2_118 = arith.constant 2 : index
    %c3_119 = arith.constant 3 : index
    %277 = memref.load %arg3[%c2_118, %c3_119] : memref<3x8xf32, #tpu.memory_space<smem>>
    %278 = vector.broadcast %277 : f32 to vector<1x8xf32>
    %279 = arith.mulf %278, %96 : vector<1x8xf32>
    %280 = arith.addf %276, %279 : vector<1x8xf32>
    %c2_120 = arith.constant 2 : index
    %c4_121 = arith.constant 4 : index
    %281 = memref.load %arg3[%c2_120, %c4_121] : memref<3x8xf32, #tpu.memory_space<smem>>
    %282 = vector.broadcast %281 : f32 to vector<1x8xf32>
    %283 = arith.mulf %282, %120 : vector<1x8xf32>
    %284 = arith.addf %280, %283 : vector<1x8xf32>
    %c2_122 = arith.constant 2 : index
    %c5_123 = arith.constant 5 : index
    %285 = memref.load %arg3[%c2_122, %c5_123] : memref<3x8xf32, #tpu.memory_space<smem>>
    %286 = vector.broadcast %285 : f32 to vector<1x8xf32>
    %287 = arith.mulf %286, %144 : vector<1x8xf32>
    %288 = arith.addf %284, %287 : vector<1x8xf32>
    %c2_124 = arith.constant 2 : index
    %c6_125 = arith.constant 6 : index
    %289 = memref.load %arg3[%c2_124, %c6_125] : memref<3x8xf32, #tpu.memory_space<smem>>
    %290 = vector.broadcast %289 : f32 to vector<1x8xf32>
    %291 = arith.mulf %290, %168 : vector<1x8xf32>
    %292 = arith.addf %288, %291 : vector<1x8xf32>
    %c2_126 = arith.constant 2 : index
    %c7_127 = arith.constant 7 : index
    %293 = memref.load %arg3[%c2_126, %c7_127] : memref<3x8xf32, #tpu.memory_space<smem>>
    %294 = vector.broadcast %293 : f32 to vector<1x8xf32>
    %295 = arith.mulf %294, %192 : vector<1x8xf32>
    %296 = arith.addf %292, %295 : vector<1x8xf32>
    %c2_128 = arith.constant 2 : index
    %c0_129 = arith.constant 0 : index
    %297 = vector.load %arg5[%c2_128, %c0_129] : memref<3x8xf32, #tpu.memory_space<vmem>>, vector<1x8xf32>
    tpu.vector_store %arg5[%c2_128, %c0_129], %296 {strides = array<i32>} : memref<3x8xf32, #tpu.memory_space<vmem>>, vector<1x8xf32>,
    return
  }
}

</mosaic_0001>

<llo_original>
// kernel: tpu_custom_call.1
$region0: #{tpu_custom_call.1}
  #allocation0 [shape = 'u32[]', space=smem, size = 0x4, offset = 0x4, fixed_abs, tag = 'smem constant byte address 0x4 - core index']
  #allocation1 [shape = 'u32[72,128]{1,0:T(1,128)}', space=vmem, size = 0x9000, scoped, tag = 'internal scratch']
  %s0 = inlined_call_operand.vmem [shape: f32[4,8], index: 0, kind: input, shape index: {}]
  %s1 = inlined_call_operand.vmem [shape: f32[8,4], index: 1, kind: input, shape index: {}]
  %s2 = inlined_call_operand.vmem [shape: f32[8], index: 2, kind: input, shape index: {}]
  %s3 = inlined_call_operand.vmem [shape: f32[3,8], index: 3, kind: input, shape index: {}]
  %s4 = inlined_call_operand.vmem [shape: f32[3], index: 4, kind: input, shape index: {}]
  %s5 = inlined_call_operand.hbm [shape: f32[3,8], index: 5, kind: output, shape index: {}]
  %s6 = sld [smem:[#allocation0]]
  $region46: #{tpu_custom_call.1} parent=0
    _
  %s8 = ssub.s32 1, %s6
  %s9 = scalar_select 0, %s8, %s6
  $region1: #{tpu_custom_call.1} parent=0
    #allocation2 [shape = 'u8[4096]{0}', space=smem, size = 0x1000, scoped, tag = 'input window, operand 1, single buffered']
    #allocation3 [shape = 's32[1]{0}', space=sflag, size = 0x4, scoped, tag = 'scoped memory for tpu_custom_call.1']
    #allocation4 [shape = 's32[1]{0}', space=sflag, size = 0x4, scoped, tag = 'scoped memory for tpu_custom_call.1']
    #allocation5 [shape = 'u8[512]{0}', space=smem, size = 0x200, scoped, tag = 'input window, operand 2, single buffered']
    #allocation6 [shape = 's32[1]{0}', space=sflag, size = 0x4, scoped, tag = 'scoped memory for tpu_custom_call.1']
    #allocation7 [shape = 'u8[2048]{0}', space=smem, size = 0x800, scoped, tag = 'input window, operand 3, single buffered']
    #allocation8 [shape = 'u8[512]{0}', space=smem, size = 0x200, scoped, tag = 'input window, operand 4, single buffered']
    #allocation9 [shape = 's32[1]{0}', space=sflag, size = 0x4, scoped, tag = 'scoped memory for tpu_custom_call.1']
    #allocation10 [shape = 'u8[2048]{0}', space=vmem, size = 0x800, scoped, tag = 'output window, operand 0, single buffered']
    %10 = vsyncpa [#allocation4], 0
    %11 = vsyncpa [#allocation6], 0
    %12 = vsyncpa [#allocation9], 0
    %13 = vsyncpa [#allocation3], 0
    // Predicated region
    $region2: #{tpu_custom_call.1} parent=1 // pred_check
      _
    $region3: #{tpu_custom_call.1} parent=1 // pred_check_branch
      %15 = sbr.rel (0) target = $region5
    $region4: #{tpu_custom_call.1} parent=1 // pred_region
      _
    $region5: #{tpu_custom_call.1} parent=1 // pred_fallthru
      _
    // Predicated region
    $region6: #{tpu_custom_call.1} parent=1 // pred_check
      _
    $region7: #{tpu_custom_call.1} parent=1 // pred_check_branch
      %17 = sbr.rel (0) target = $region9
    $region8: #{tpu_custom_call.1} parent=1 // pred_region
      %19 = vsyncadd [#allocation4], 0
      %s21 = sshll.u32 %s1, 4
      %s22 = int_to_ptr.vmem [resolvable:$true] %s21
      %24 = dma.vmem_to_smem %s22, 128, [#allocation2], [#allocation4]
    $region9: #{tpu_custom_call.1} parent=1 // pred_fallthru
      _
    // Predicated region
    $region10: #{tpu_custom_call.1} parent=1 // pred_check
      _
    $region11: #{tpu_custom_call.1} parent=1 // pred_check_branch
      %26 = sbr.rel (0) target = $region13
    $region12: #{tpu_custom_call.1} parent=1 // pred_region
      %28 = vsyncadd [#allocation6], 0
      %s30 = sshll.u32 %s2, 4
      %s31 = int_to_ptr.vmem [resolvable:$true] %s30
      %33 = dma.vmem_to_smem %s31, 16, [#allocation5], [#allocation6]
    $region13: #{tpu_custom_call.1} parent=1 // pred_fallthru
      _
    // Predicated region
    $region14: #{tpu_custom_call.1} parent=1 // pred_check
      _
    $region15: #{tpu_custom_call.1} parent=1 // pred_check_branch
      %35 = sbr.rel (0) target = $region17
    $region16: #{tpu_custom_call.1} parent=1 // pred_region
      %37 = vsyncadd [#allocation6], 0
      %s39 = sshll.u32 %s3, 4
      %s40 = int_to_ptr.vmem [resolvable:$true] %s39
      %42 = dma.vmem_to_smem %s40, 64, [#allocation7], [#allocation6]
    $region17: #{tpu_custom_call.1} parent=1 // pred_fallthru
      _
    // Predicated region
    $region18: #{tpu_custom_call.1} parent=1 // pred_check
      _
    $region19: #{tpu_custom_call.1} parent=1 // pred_check_branch
      %44 = sbr.rel (0) target = $region21
    $region20: #{tpu_custom_call.1} parent=1 // pred_region
      %46 = vsyncadd [#allocation9], 0
      %s48 = sshll.u32 %s4, 4
      %s49 = int_to_ptr.vmem [resolvable:$true] %s48
      %51 = dma.vmem_to_smem %s49, 16, [#allocation8], [#allocation9]
    $region21: #{tpu_custom_call.1} parent=1 // pred_fallthru
      _
    // Predicated region
    $region22: #{tpu_custom_call.1} parent=1 // pred_check
      _
    $region23: #{tpu_custom_call.1} parent=1 // pred_check_branch
      %53 = sbr.rel (0) target = $region25
    $region24: #{tpu_custom_call.1} parent=1 // pred_region
      %55 = dma.done [#allocation4], 128
    $region25: #{tpu_custom_call.1} parent=1 // pred_fallthru
      _
    // Predicated region
    $region26: #{tpu_custom_call.1} parent=1 // pred_check
      _
    $region27: #{tpu_custom_call.1} parent=1 // pred_check_branch
      %57 = sbr.rel (0) target = $region29
    $region28: #{tpu_custom_call.1} parent=1 // pred_region
      %59 = dma.done [#allocation6], 16
    $region29: #{tpu_custom_call.1} parent=1 // pred_fallthru
      _
    // Predicated region
    $region30: #{tpu_custom_call.1} parent=1 // pred_check
      _
    $region31: #{tpu_custom_call.1} parent=1 // pred_check_branch
      %61 = sbr.rel (0) target = $region33
    $region32: #{tpu_custom_call.1} parent=1 // pred_region
      %63 = dma.done [#allocation6], 64
    $region33: #{tpu_custom_call.1} parent=1 // pred_fallthru
      _
    // Predicated region
    $region34: #{tpu_custom_call.1} parent=1 // pred_check
      _
    $region35: #{tpu_custom_call.1} parent=1 // pred_check_branch
      %65 = sbr.rel (0) target = $region37
    $region36: #{tpu_custom_call.1} parent=1 // pred_region
      %67 = dma.done [#allocation9], 16
    $region37: #{tpu_custom_call.1} parent=1 // pred_fallthru
      _
    %68 = sfence
    %v69 = vld [vmem:[%s0] sm:$0xf]
    %s70 = sld [smem:[#allocation5]]
    %v71 = vstv %s70
    %s72 = sld [smem:[#allocation2]]
    %v73 = vstv %s72
    %v74 = vmul.f32 %v73, %v69
    %v75 = vadd.f32 %v71, %v74
    %s76 = sld [smem:[#allocation2 + $0x1]]
    %v77 = vstv %s76
    %v78 = vmul.f32 %v77, %v69
    %v80 = vrot.slane %v78, 1
    %v82 = vadd.f32 %v75, %v80
    %s83 = sld [smem:[#allocation2 + $0x2]]
    %v84 = vstv %s83
    %v85 = vmul.f32 %v84, %v69
    %v87 = vrot.slane %v85, 2
    %v89 = vadd.f32 %v82, %v87
    %s90 = sld [smem:[#allocation2 + $0x3]]
    %v91 = vstv %s90
    %v92 = vmul.f32 %v91, %v69
    %v94 = vrot.slane %v92, 3
    %v96 = vadd.f32 %v89, %v94
    %v97 = vmax.f32 %v96, 0.0
    %s98 = sld [smem:[#allocation5 + $0x1]]
    %v99 = vstv %s98
    %s100 = sld [smem:[#allocation2 + $0x80]]
    %v101 = vstv %s100
    %v102 = vmul.f32 %v101, %v69
    %v103 = vadd.f32 %v99, %v102
    %s104 = sld [smem:[#allocation2 + $0x81]]
    %v105 = vstv %s104
    %v106 = vmul.f32 %v105, %v69
    %v108 = vrot.slane %v106, 1
    %v110 = vadd.f32 %v103, %v108
    %s111 = sld [smem:[#allocation2 + $0x82]]
    %v112 = vstv %s111
    %v113 = vmul.f32 %v112, %v69
    %v115 = vrot.slane %v113, 2
    %v117 = vadd.f32 %v110, %v115
    %s118 = sld [smem:[#allocation2 + $0x83]]
    %v119 = vstv %s118
    %v120 = vmul.f32 %v119, %v69
    %v122 = vrot.slane %v120, 3
    %v124 = vadd.f32 %v117, %v122
    %v125 = vmax.f32 %v124, 0.0
    %s126 = sld [smem:[#allocation5 + $0x2]]
    %v127 = vstv %s126
    %s128 = sld [smem:[#allocation2 + $0x100]]
    %v129 = vstv %s128
    %v130 = vmul.f32 %v129, %v69
    %v131 = vadd.f32 %v127, %v130
    %s132 = sld [smem:[#allocation2 + $0x101]]
    %v133 = vstv %s132
    %v134 = vmul.f32 %v133, %v69
    %v136 = vrot.slane %v134, 1
    %v138 = vadd.f32 %v131, %v136
    %s139 = sld [smem:[#allocation2 + $0x102]]
    %v140 = vstv %s139
    %v141 = vmul.f32 %v140, %v69
    %v143 = vrot.slane %v141, 2
    %v145 = vadd.f32 %v138, %v143
    %s146 = sld [smem:[#allocation2 + $0x103]]
    %v147 = vstv %s146
    %v148 = vmul.f32 %v147, %v69
    %v150 = vrot.slane %v148, 3
    %v152 = vadd.f32 %v145, %v150
    %v153 = vmax.f32 %v152, 0.0
    %s154 = sld [smem:[#allocation5 + $0x3]]
    %v155 = vstv %s154
    %s156 = sld [smem:[#allocation2 + $0x180]]
    %v157 = vstv %s156
    %v158 = vmul.f32 %v157, %v69
    %v159 = vadd.f32 %v155, %v158
    %s160 = sld [smem:[#allocation2 + $0x181]]
    %v161 = vstv %s160
    %v162 = vmul.f32 %v161, %v69
    %v164 = vrot.slane %v162, 1
    %v166 = vadd.f32 %v159, %v164
    %s167 = sld [smem:[#allocation2 + $0x182]]
    %v168 = vstv %s167
    %v169 = vmul.f32 %v168, %v69
    %v171 = vrot.slane %v169, 2
    %v173 = vadd.f32 %v166, %v171
    %s174 = sld [smem:[#allocation2 + $0x183]]
    %v175 = vstv %s174
    %v176 = vmul.f32 %v175, %v69
    %v178 = vrot.slane %v176, 3
    %v180 = vadd.f32 %v173, %v178
    %v181 = vmax.f32 %v180, 0.0
    %s182 = sld [smem:[#allocation5 + $0x4]]
    %v183 = vstv %s182
    %s184 = sld [smem:[#allocation2 + $0x200]]
    %v185 = vstv %s184
    %v186 = vmul.f32 %v185, %v69
    %v187 = vadd.f32 %v183, %v186
    %s188 = sld [smem:[#allocation2 + $0x201]]
    %v189 = vstv %s188
    %v190 = vmul.f32 %v189, %v69
    %v192 = vrot.slane %v190, 1
    %v194 = vadd.f32 %v187, %v192
    %s195 = sld [smem:[#allocation2 + $0x202]]
    %v196 = vstv %s195
    %v197 = vmul.f32 %v196, %v69
    %v199 = vrot.slane %v197, 2
    %v201 = vadd.f32 %v194, %v199
    %s202 = sld [smem:[#allocation2 + $0x203]]
    %v203 = vstv %s202
    %v204 = vmul.f32 %v203, %v69
    %v206 = vrot.slane %v204, 3
    %v208 = vadd.f32 %v201, %v206
    %v209 = vmax.f32 %v208, 0.0
    %s210 = sld [smem:[#allocation5 + $0x5]]
    %v211 = vstv %s210
    %s212 = sld [smem:[#allocation2 + $0x280]]
    %v213 = vstv %s212
    %v214 = vmul.f32 %v213, %v69
    %v215 = vadd.f32 %v211, %v214
    %s216 = sld [smem:[#allocation2 + $0x281]]
    %v217 = vstv %s216
    %v218 = vmul.f32 %v217, %v69
    %v220 = vrot.slane %v218, 1
    %v222 = vadd.f32 %v215, %v220
    %s223 = sld [smem:[#allocation2 + $0x282]]
    %v224 = vstv %s223
    %v225 = vmul.f32 %v224, %v69
    %v227 = vrot.slane %v225, 2
    %v229 = vadd.f32 %v222, %v227
    %s230 = sld [smem:[#allocation2 + $0x283]]
    %v231 = vstv %s230
    %v232 = vmul.f32 %v231, %v69
    %v234 = vrot.slane %v232, 3
    %v236 = vadd.f32 %v229, %v234
    %v237 = vmax.f32 %v236, 0.0
    %s238 = sld [smem:[#allocation5 + $0x6]]
    %v239 = vstv %s238
    %s240 = sld [smem:[#allocation2 + $0x300]]
    %v241 = vstv %s240
    %v242 = vmul.f32 %v241, %v69
    %v243 = vadd.f32 %v239, %v242
    %s244 = sld [smem:[#allocation2 + $0x301]]
    %v245 = vstv %s244
    %v246 = vmul.f32 %v245, %v69
    %v248 = vrot.slane %v246, 1
    %v250 = vadd.f32 %v243, %v248
    %s251 = sld [smem:[#allocation2 + $0x302]]
    %v252 = vstv %s251
    %v253 = vmul.f32 %v252, %v69
    %v255 = vrot.slane %v253, 2
    %v257 = vadd.f32 %v250, %v255
    %s258 = sld [smem:[#allocation2 + $0x303]]
    %v259 = vstv %s258
    %v260 = vmul.f32 %v259, %v69
    %v262 = vrot.slane %v260, 3
    %v264 = vadd.f32 %v257, %v262
    %v265 = vmax.f32 %v264, 0.0
    %s266 = sld [smem:[#allocation5 + $0x7]]
    %v267 = vstv %s266
    %s268 = sld [smem:[#allocation2 + $0x380]]
    %v269 = vstv %s268
    %v270 = vmul.f32 %v269, %v69
    %v271 = vadd.f32 %v267, %v270
    %s272 = sld [smem:[#allocation2 + $0x381]]
    %v273 = vstv %s272
    %v274 = vmul.f32 %v273, %v69
    %v276 = vrot.slane %v274, 1
    %v278 = vadd.f32 %v271, %v276
    %s279 = sld [smem:[#allocation2 + $0x382]]
    %v280 = vstv %s279
    %v281 = vmul.f32 %v280, %v69
    %v283 = vrot.slane %v281, 2
    %v285 = vadd.f32 %v278, %v283
    %s286 = sld [smem:[#allocation2 + $0x383]]
    %v287 = vstv %s286
    %v288 = vmul.f32 %v287, %v69
    %v290 = vrot.slane %v288, 3
    %v292 = vadd.f32 %v285, %v290
    %v293 = vmax.f32 %v292, 0.0
    %s294 = sld [smem:[#allocation8]]
    %v295 = vstv %s294
    %s296 = sld [smem:[#allocation7]]
    %v297 = vstv %s296
    %v298 = vmul.f32 %v297, %v97
    %v299 = vadd.f32 %v295, %v298
    %s300 = sld [smem:[#allocation7 + $0x1]]
    %v301 = vstv %s300
    %v302 = vmul.f32 %v301, %v125
    %v303 = vadd.f32 %v299, %v302
    %s304 = sld [smem:[#allocation7 + $0x2]]
    %v305 = vstv %s304
    %v306 = vmul.f32 %v305, %v153
    %v307 = vadd.f32 %v303, %v306
    %s308 = sld [smem:[#allocation7 + $0x3]]
    %v309 = vstv %s308
    %v310 = vmul.f32 %v309, %v181
    %v311 = vadd.f32 %v307, %v310
    %s312 = sld [smem:[#allocation7 + $0x4]]
    %v313 = vstv %s312
    %v314 = vmul.f32 %v313, %v209
    %v315 = vadd.f32 %v311, %v314
    %s316 = sld [smem:[#allocation7 + $0x5]]
    %v317 = vstv %s316
    %v318 = vmul.f32 %v317, %v237
    %v319 = vadd.f32 %v315, %v318
    %s320 = sld [smem:[#allocation7 + $0x6]]
    %v321 = vstv %s320
    %v322 = vmul.f32 %v321, %v265
    %v323 = vadd.f32 %v319, %v322
    %s324 = sld [smem:[#allocation7 + $0x7]]
    %v325 = vstv %s324
    %v326 = vmul.f32 %v325, %v293
    %v327 = vadd.f32 %v323, %v326
    %vm328 = vcmask 57344
    %329 = vst.msk [vmem:[#allocation10] sm:$0x1] %vm328, %v327
    %s330 = sld [smem:[#allocation8 + $0x1]]
    %v331 = vstv %s330
    %s332 = sld [smem:[#allocation7 + $0x80]]
    %v333 = vstv %s332
    %v334 = vmul.f32 %v333, %v97
    %v335 = vadd.f32 %v331, %v334
    %s336 = sld [smem:[#allocation7 + $0x81]]
    %v337 = vstv %s336
    %v338 = vmul.f32 %v337, %v125
    %v339 = vadd.f32 %v335, %v338
    %s340 = sld [smem:[#allocation7 + $0x82]]
    %v341 = vstv %s340
    %v342 = vmul.f32 %v341, %v153
    %v343 = vadd.f32 %v339, %v342
    %s344 = sld [smem:[#allocation7 + $0x83]]
    %v345 = vstv %s344
    %v346 = vmul.f32 %v345, %v181
    %v347 = vadd.f32 %v343, %v346
    %s348 = sld [smem:[#allocation7 + $0x84]]
    %v349 = vstv %s348
    %v350 = vmul.f32 %v349, %v209
    %v351 = vadd.f32 %v347, %v350
    %s352 = sld [smem:[#allocation7 + $0x85]]
    %v353 = vstv %s352
    %v354 = vmul.f32 %v353, %v237
    %v355 = vadd.f32 %v351, %v354
    %s356 = sld [smem:[#allocation7 + $0x86]]
    %v357 = vstv %s356
    %v358 = vmul.f32 %v357, %v265
    %v359 = vadd.f32 %v355, %v358
    %s360 = sld [smem:[#allocation7 + $0x87]]
    %v361 = vstv %s360
    %v362 = vmul.f32 %v361, %v293
    %v363 = vadd.f32 %v359, %v362
    %364 = vst.msk [vmem:[#allocation10 + $0x1] sm:$0x1] %vm328, %v363
    %s365 = sld [smem:[#allocation8 + $0x2]]
    %v366 = vstv %s365
    %s367 = sld [smem:[#allocation7 + $0x100]]
    %v368 = vstv %s367
    %v369 = vmul.f32 %v368, %v97
    %v370 = vadd.f32 %v366, %v369
    %s371 = sld [smem:[#allocation7 + $0x101]]
    %v372 = vstv %s371
    %v373 = vmul.f32 %v372, %v125
    %v374 = vadd.f32 %v370, %v373
    %s375 = sld [smem:[#allocation7 + $0x102]]
    %v376 = vstv %s375
    %v377 = vmul.f32 %v376, %v153
    %v378 = vadd.f32 %v374, %v377
    %s379 = sld [smem:[#allocation7 + $0x103]]
    %v380 = vstv %s379
    %v381 = vmul.f32 %v380, %v181
    %v382 = vadd.f32 %v378, %v381
    %s383 = sld [smem:[#allocation7 + $0x104]]
    %v384 = vstv %s383
    %v385 = vmul.f32 %v384, %v209
    %v386 = vadd.f32 %v382, %v385
    %s387 = sld [smem:[#allocation7 + $0x105]]
    %v388 = vstv %s387
    %v389 = vmul.f32 %v388, %v237
    %v390 = vadd.f32 %v386, %v389
    %s391 = sld [smem:[#allocation7 + $0x106]]
    %v392 = vstv %s391
    %v393 = vmul.f32 %v392, %v265
    %v394 = vadd.f32 %v390, %v393
    %s395 = sld [smem:[#allocation7 + $0x107]]
    %v396 = vstv %s395
    %v397 = vmul.f32 %v396, %v293
    %v398 = vadd.f32 %v394, %v397
    %399 = vst.msk [vmem:[#allocation10 + $0x2] sm:$0x1] %vm328, %v398
    // Predicated region
    $region38: #{tpu_custom_call.1} parent=1 // pred_check
      _
    $region39: #{tpu_custom_call.1} parent=1 // pred_check_branch
      %401 = sbr.rel (0) target = $region41
    $region40: #{tpu_custom_call.1} parent=1 // pred_region
      %403 = vsyncadd [#allocation3], 0
      %s405 = sshll.u32 [#allocation10], 4
      %s406 = int_to_ptr.vmem [resolvable:$true] %s405
      %s407 = sshll.u32 %s5, 4
      %s408 = int_to_ptr.hbm [resolvable:$true] %s407
      %410 = dma.vmem_to_hbm [thread:$0]  %s406, 64, %s408, [#allocation3]
    $region41: #{tpu_custom_call.1} parent=1 // pred_fallthru
      _
    // Predicated region
    $region42: #{tpu_custom_call.1} parent=1 // pred_check
      _
    $region43: #{tpu_custom_call.1} parent=1 // pred_check_branch
      %412 = sbr.rel (0) target = $region45
    $region44: #{tpu_custom_call.1} parent=1 // pred_region
      %414 = dma.done [#allocation3], 64
    $region45: #{tpu_custom_call.1} parent=1 // pred_fallthru
      _
    %415 = vsyncpa [#allocation3], 1
    %416 = vsyncpa [#allocation4], 1
    %417 = vsyncpa [#allocation6], 1
    %418 = vsyncpa [#allocation9], 1

</llo_original>
